<compile_context>
chip_gen: v7x
topology: tpu7x:2x2x1
jax: 0.10.0
libtpu: 0.0.40
codegen_flags: <defaults>
</compile_context>

<pallas_src>
import functools

import jax
import jax.numpy as jnp
from jax.experimental import pallas as pl
from jax.experimental.pallas import tpu as pltpu


def _label_smoothing_kernel(x_ref, tgt_ref, out_ref, *, confidence, smoothing):
    x = x_ref[...]                                   # (tb, C) logits, streamed dtype
    tgt = tgt_ref[...]                               # (tb, 1) int32 class indices
    tb, c = x.shape

    # Row max on the streamed dtype (exact for bf16); only the (tb, 1) column
    # is upcast to f32.
    m = jnp.max(x, axis=-1, keepdims=True).astype(jnp.float32)

    # log-sum-exp of the shifted logits; the f32 upcast is fused into the exp
    # input, so no (tb, C) f32 temporary stays live across reductions.
    lse = jnp.log(
        jnp.sum(jnp.exp(x.astype(jnp.float32) - m), axis=-1, keepdims=True))

    # Sum of logits (f32 accumulation) for the uniform smoothing term.
    sum_x = jnp.sum(x.astype(jnp.float32), axis=-1, keepdims=True)

    # Target logit via compare+select+sum (exactly one nonzero per row, so the
    # narrow-dtype accumulation is exact); upcast only the (tb, 1) result.
    col_ids = jax.lax.broadcasted_iota(jnp.int32, (tb, c), 1)
    x_tgt = jnp.sum(jnp.where(col_ids == tgt, x, jnp.zeros_like(x)),
                    axis=-1, keepdims=True).astype(jnp.float32)

    # loss_row = confidence*nll + smoothing*smooth_loss
    #          = lse + m - (smoothing/C)*sum(x) - confidence*x_tgt
    out_ref[...] = (lse + m
                    - jnp.float32(smoothing / c) * sum_x
                    - jnp.float32(confidence) * x_tgt)


def label_smoothing_loss(x, target, smoothing=0.1, block_rows=1024):
    """JAX/Pallas equivalent of LabelSmoothing.forward(x, target)."""
    confidence = 1.0 - smoothing
    B, C = x.shape
    target = target.astype(jnp.int32).reshape(B, 1)

    # Tile sizing: 2 MiB per logits buffer (double-buffered by Pallas), rows
    # aligned to the dtype's packed sublane count.  With the un-materialized
    # f32 intermediates this keeps the total per-TensorCore footprint well
    # under the scoped limit on every generation (incl. v7x's 64 MiB VMEM).
    itemsize = x.dtype.itemsize
    packing = max(1, 4 // itemsize)                 # rows packed per 32-bit sublane cell
    row_align = 8 * packing                         # 8 (f32) / 16 (bf16) / 32 (int8)
    budget = 2 * 1024 * 1024                        # bytes per logits buffer
    tb = min(block_rows, max(row_align, budget // max(1, C * itemsize)))
    tb = max(row_align, (tb // row_align) * row_align)
    if tb >= B:
        tb = B                                      # full-extent block (any B allowed)
    num_tiles = pl.cdiv(B, tb)

    kernel = functools.partial(
        _label_smoothing_kernel,
        confidence=float(confidence),
        smoothing=float(smoothing),
    )

    cost = pl.CostEstimate(
        flops=9 * B * C,
        transcendentals=B * C,                      # exp per element (+ B logs)
        bytes_accessed=B * C * itemsize + B * 4 + B * 4,
    )

    per_row = pl.pallas_call(
        kernel,
        out_shape=jax.ShapeDtypeStruct((B, 1), jnp.float32),
        grid=(num_tiles,),
        in_specs=[
            pl.BlockSpec((tb, C), lambda i: (i, 0)),   # logits tile (streamed dtype)
            pl.BlockSpec((tb, 1), lambda i: (i, 0)),   # targets tile
        ],
        out_specs=pl.BlockSpec((tb, 1), lambda i: (i, 0)),
        compiler_params=pltpu.CompilerParams(
            dimension_semantics=("parallel",),         # independent tiles (v7x 2-TC)
            vmem_limit_bytes=32 * 1024 * 1024,
        ),
        cost_estimate=cost,
    )(x, target)

    # Tiny final reduction (B values) done by XLA in the wrapper.
    return jnp.mean(per_row)


def _reference(x, target, smoothing=0.1):
    confidence = 1.0 - smoothing
    logprobs = jax.nn.log_softmax(x.astype(jnp.float32), axis=-1)
    nll = -jnp.take_along_axis(logprobs, target.astype(jnp.int32)[:, None], axis=-1)[:, 0]
    smooth = -jnp.mean(logprobs, axis=-1)
    return jnp.mean(confidence * nll + smoothing * smooth)


if __name__ == "__main__":
    B, C = 64, 128         # batch, num_classes (small demo shapes)
    smoothing = 0.1

    key = jax.random.PRNGKey(0)
    kx, kt = jax.random.split(key)
    x = jax.random.normal(kx, (B, C), dtype=jnp.float32)
    target = jax.random.randint(kt, (B,), 0, C, dtype=jnp.int32)

    # block_rows=16 -> 4 grid steps, exercising the batch-tiled pipelined path.
    loss = jax.block_until_ready(label_smoothing_loss(x, target, smoothing, block_rows=16))
    ref = jax.block_until_ready(_reference(x, target, smoothing))

    assert jnp.allclose(loss, ref, atol=1e-5, rtol=1e-5), (loss, ref)
    print("KERNEL_OK")
</pallas_src>

<mosaic_0001>
module attributes {stable_mosaic.version = 11 : i64} {
  func.func @_label_smoothing_kernel(%arg0: i32, %arg1: memref<16x128xf32, #tpu.memory_space<vmem>>, %arg2: memref<16x1xi32, #tpu.memory_space<vmem>>, %arg3: memref<16x1xf32, #tpu.memory_space<vmem>>) attributes {dimension_semantics = [#tpu.dimension_semantics<parallel>], iteration_bounds = array<i64: 4>, scalar_prefetch = 0 : i64, scratch_operands = 0 : i64, tpu.core_type = #tpu.core_type<tc>, window_params = [{transform_indices = @transform_0, window_bounds = array<i64: 16, 128>}, {transform_indices = @transform_1, window_bounds = array<i64: 16, 1>}, {transform_indices = @transform_2, window_bounds = array<i64: 16, 1>}]} {
    %c0 = arith.constant 0 : index
    %c0_0 = arith.constant 0 : index
    %0 = vector.load %arg1[%c0, %c0_0] : memref<16x128xf32, #tpu.memory_space<vmem>>, vector<16x128xf32>
    %c0_1 = arith.constant 0 : index
    %c0_2 = arith.constant 0 : index
    %1 = vector.load %arg2[%c0_1, %c0_2] : memref<16x1xi32, #tpu.memory_space<vmem>>, vector<16x1xi32>
    %cst = arith.constant dense<0xFF800000> : vector<16xf32>
    %2 = vector.multi_reduction <maximumf>, %0, %cst [1] : vector<16x128xf32> to vector<16xf32>
    %3 = vector.shape_cast %2 : vector<16xf32> to vector<16x1xf32>
    %4 = vector.broadcast %3 : vector<16x1xf32> to vector<16x128xf32>
    %5 = arith.subf %0, %4 : vector<16x128xf32>
    %6 = math.exp %5 : vector<16x128xf32>
    %cst_3 = arith.constant dense<0.000000e+00> : vector<16xf32>
    %7 = vector.multi_reduction <add>, %6, %cst_3 [1] : vector<16x128xf32> to vector<16xf32>
    %8 = vector.shape_cast %7 : vector<16xf32> to vector<16x1xf32>
    %9 = math.log %8 : vector<16x1xf32>
    %cst_4 = arith.constant dense<0.000000e+00> : vector<16xf32>
    %10 = vector.multi_reduction <add>, %0, %cst_4 [1] : vector<16x128xf32> to vector<16xf32>
    %11 = vector.shape_cast %10 : vector<16xf32> to vector<16x1xf32>
    %12 = tpu.iota {dimensions = array<i32: 1>} : vector<16x128xi32>
    %13 = vector.broadcast %1 : vector<16x1xi32> to vector<16x128xi32>
    %14 = arith.cmpi eq, %12, %13 : vector<16x128xi32>
    %cst_5 = arith.constant 0.000000e+00 : f32
    %15 = vector.broadcast %cst_5 : f32 to vector<16x128xf32>
    %16 = arith.select %14, %0, %15 : vector<16x128xi1>, vector<16x128xf32>
    %cst_6 = arith.constant dense<0.000000e+00> : vector<16xf32>
    %17 = vector.multi_reduction <add>, %16, %cst_6 [1] : vector<16x128xf32> to vector<16xf32>
    %18 = vector.shape_cast %17 : vector<16xf32> to vector<16x1xf32>
    %19 = arith.addf %9, %3 : vector<16x1xf32>
    %cst_7 = arith.constant 7.812500e-04 : f32
    %20 = vector.broadcast %cst_7 : f32 to vector<16x1xf32>
    %21 = arith.mulf %20, %11 : vector<16x1xf32>
    %22 = arith.subf %19, %21 : vector<16x1xf32>
    %cst_8 = arith.constant 0.899999976 : f32
    %23 = vector.broadcast %cst_8 : f32 to vector<16x1xf32>
    %24 = arith.mulf %23, %18 : vector<16x1xf32>
    %25 = arith.subf %22, %24 : vector<16x1xf32>
    %c0_9 = arith.constant 0 : index
    %c0_10 = arith.constant 0 : index
    %26 = vector.load %arg3[%c0_9, %c0_10] : memref<16x1xf32, #tpu.memory_space<vmem>>, vector<16x1xf32>
    tpu.vector_store %arg3[%c0_9, %c0_10], %25 {strides = array<i32>} : memref<16x1xf32, #tpu.memory_space<vmem>>, vector<16x1xf32>,
    return
  }
  func.func @transform_0(%arg0: i32) -> (i32, i32) {
    %c0_i32 = arith.constant 0 : i32
    %c0_i32_0 = arith.constant 0 : i32
    return %arg0, %c0_i32 : i32, i32
  }
  func.func @transform_1(%arg0: i32) -> (i32, i32) {
    %c0_i32 = arith.constant 0 : i32
    %c0_i32_0 = arith.constant 0 : i32
    return %arg0, %c0_i32 : i32, i32
  }
  func.func @transform_2(%arg0: i32) -> (i32, i32) {
    %c0_i32 = arith.constant 0 : i32
    %c0_i32_0 = arith.constant 0 : i32
    return %arg0, %c0_i32 : i32, i32
  }
}

</mosaic_0001>

<llo_original>
// kernel: tpu_custom_call.1
$region0: #{tpu_custom_call.1}
  #allocation0 [shape = 'u32[]', space=smem, size = 0x4, offset = 0x4, fixed_abs, tag = 'smem constant byte address 0x4 - core index']
  #allocation1 [shape = 'u32[144,128]{1,0:T(1,128)}', space=vmem, size = 0x12000, scoped, tag = 'internal scratch']
  %s0 = inlined_call_operand.vmem [shape: f32[64,128], index: 0, kind: input, shape index: {}]
  %s1 = inlined_call_operand.vmem [shape: s32[64,1], index: 1, kind: input, shape index: {}]
  %s2 = inlined_call_operand.vmem [shape: f32[64,1], index: 2, kind: output, shape index: {}]
  %s3 = sld [smem:[#allocation0]]
  $region41: #{tpu_custom_call.1} parent=0
    _
  %s5 = ssub.s32 1, %s3
  %s6 = scalar_select 0, %s5, %s3
  loop: start=0, step=1, limit=6
  $region2: #{tpu_custom_call.1} parent=0 // loop_pre_header
    _
  $region3: #{tpu_custom_call.1} parent=0 // loop_header
    %s8 = sphi 0, %s12
    %p9 = scmp.ge.s32.totalorder %s8, 6
    %s18 = sphi 0, %s20
    %s21 = sphi 0, %s18
    %s22 = sphi 0, %s21
    %s38 = sphi 0, %s22
    %s44 = sphi 0, %s46
    %s47 = sphi 0, %s44
    %s48 = sphi 0, %s47
    %s64 = sphi 0, %s48
    %s70 = sphi 0, %s72
    %s73 = sphi 0, %s70
    %s74 = sphi 0, %s73
    %s90 = sphi 0, %s74
  $region4: #{tpu_custom_call.1} parent=0 // loop_header_branch
    %11 = sbr.rel (%p9) target = $region8
  $region5: #{tpu_custom_call.1} parent=0 // loop_body
    %s13 = ssub.s32 %s8, 1
    %s14 = ssub.s32 %s8, 2
    %s15 = sadd.s32 %s8, 1
    %s16 = ssub.s32 %s8, %s15
    %p17 = scmp.eq.s32.totalorder %s16, 0
    %s19 = sadd.s32 %s18, 1
    %s20 = scalar_select %p17, %s18, %s19
    %p23 = pneg %p17
    %p24 = scmp.eq.s32.totalorder %s8, 3
    %p25 = por %p23, %p24
    %p26 = scmp.ne.s32.totalorder %s18, %s21
    %p27 = scmp.eq.s32.totalorder %s8, 0
    %p28 = por %p26, %p27
    %p29 = scmp.ne.s32.totalorder %s18, %s21
    %p30 = scmp.eq.s32.totalorder %s13, 3
    %p31 = por %p29, %p30
    %p32 = scmp.ne.s32.totalorder %s21, %s22
    %p33 = scmp.eq.s32.totalorder %s13, 0
    %p34 = por %p32, %p33
    %p35 = scmp.ne.s32.totalorder %s21, %s22
    %p36 = scmp.eq.s32.totalorder %s14, 3
    %p37 = por %p35, %p36
    %p39 = scmp.ne.s32.totalorder %s22, %s38
    %p40 = scmp.eq.s32.totalorder %s14, 0
    %p41 = por %p39, %p40
    %s42 = ssub.s32 %s8, %s15
    %p43 = scmp.eq.s32.totalorder %s42, 0
    %s45 = sadd.s32 %s44, 1
    %s46 = scalar_select %p43, %s44, %s45
    %p49 = pneg %p43
    %p50 = scmp.eq.s32.totalorder %s8, 3
    %p51 = por %p49, %p50
    %p52 = scmp.ne.s32.totalorder %s44, %s47
    %p53 = scmp.eq.s32.totalorder %s8, 0
    %p54 = por %p52, %p53
    %p55 = scmp.ne.s32.totalorder %s44, %s47
    %p56 = scmp.eq.s32.totalorder %s13, 3
    %p57 = por %p55, %p56
    %p58 = scmp.ne.s32.totalorder %s47, %s48
    %p59 = scmp.eq.s32.totalorder %s13, 0
    %p60 = por %p58, %p59
    %p61 = scmp.ne.s32.totalorder %s47, %s48
    %p62 = scmp.eq.s32.totalorder %s14, 3
    %p63 = por %p61, %p62
    %p65 = scmp.ne.s32.totalorder %s48, %s64
    %p66 = scmp.eq.s32.totalorder %s14, 0
    %p67 = por %p65, %p66
    %s68 = ssub.s32 %s8, %s15
    %p69 = scmp.eq.s32.totalorder %s68, 0
    %s71 = sadd.s32 %s70, 1
    %s72 = scalar_select %p69, %s70, %s71
    %p75 = pneg %p69
    %p76 = scmp.eq.s32.totalorder %s8, 3
    %p77 = por %p75, %p76
    %p78 = scmp.ne.s32.totalorder %s70, %s73
    %p79 = scmp.eq.s32.totalorder %s8, 0
    %p80 = por %p78, %p79
    %p81 = scmp.ne.s32.totalorder %s70, %s73
    %p82 = scmp.eq.s32.totalorder %s13, 3
    %p83 = por %p81, %p82
    %p84 = scmp.ne.s32.totalorder %s73, %s74
    %p85 = scmp.eq.s32.totalorder %s13, 0
    %p86 = por %p84, %p85
    %p87 = scmp.ne.s32.totalorder %s73, %s74
    %p88 = scmp.eq.s32.totalorder %s14, 3
    %p89 = por %p87, %p88
    %p91 = scmp.ne.s32.totalorder %s74, %s90
    %p92 = scmp.eq.s32.totalorder %s14, 0
    %p93 = por %p91, %p92
    %p94 = scmp.le.s32.totalorder 1, %s8
    %p95 = scmp.lt.s32.totalorder %s8, 5
    %p96 = pnand %p94, %p95
    %p97 = pneg %p96
    // Predicated region
    $region9: #{tpu_custom_call.1} parent=5 // pred_check
      _
    $region10: #{tpu_custom_call.1} parent=5 // pred_check_branch
      %99 = sbr.rel (%p96) target = $region12
    $region11: #{tpu_custom_call.1} parent=5 // pred_region
      %s100 = ssub.s32 %s8, 1
    $region12: #{tpu_custom_call.1} parent=5 // pred_fallthru
      _
    %p101 = scmp.lt.s32.totalorder %s8, 4
    // Predicated region
    $region13: #{tpu_custom_call.1} parent=5 // pred_check
      %p102 = pneg %p101
    $region14: #{tpu_custom_call.1} parent=5 // pred_check_branch
      %104 = sbr.rel (%p102) target = $region16
    $region15: #{tpu_custom_call.1} parent=5 // pred_region
      // Predicated region
      $region17: #{tpu_custom_call.1} parent=15 // pred_check
        %p105 = pneg %p28
      $region18: #{tpu_custom_call.1} parent=15 // pred_check_branch
        %107 = sbr.rel (%p105) target = $region20
      $region19: #{tpu_custom_call.1} parent=15 // pred_region
        %s108 = smul.u32 2, %s8
        %p109 = scmp.lt.s32.totalorder %s108, 7
        %s110 = scalar_select %p109, %s108, 7
        %s111 = smul.addr %s110, 8
        %s112 = scalar_lea.vmem %s0, %s111
        %s113 = smul.u32 2, %s8
      $region20: #{tpu_custom_call.1} parent=15 // pred_fallthru
        _
      // Predicated region
      $region21: #{tpu_custom_call.1} parent=15 // pred_check
        %p114 = pneg %p54
      $region22: #{tpu_custom_call.1} parent=15 // pred_check_branch
        %116 = sbr.rel (%p114) target = $region24
      $region23: #{tpu_custom_call.1} parent=15 // pred_region
        %s117 = smul.u32 2, %s8
        %p118 = scmp.lt.s32.totalorder %s117, 7
        %s119 = scalar_select %p118, %s117, 7
        %s120 = smul.addr %s119, 8
        %s121 = scalar_lea.vmem %s1, %s120
        %s122 = smul.u32 2, %s8
      $region24: #{tpu_custom_call.1} parent=15 // pred_fallthru
        _
    $region16: #{tpu_custom_call.1} parent=5 // pred_fallthru
      _
    %p123 = scmp.le.s32.totalorder 1, %s8
    %p124 = scmp.lt.s32.totalorder %s8, 5
    %p125 = pnand %p123, %p124
    %p126 = pneg %p125
    // Predicated region
    $region25: #{tpu_custom_call.1} parent=5 // pred_check
      _
    $region26: #{tpu_custom_call.1} parent=5 // pred_check_branch
      %128 = sbr.rel (%p125) target = $region28
    $region27: #{tpu_custom_call.1} parent=5 // pred_region
      %s129 = ssub.s32 %s8, 1
      %s130 = smul.u32 2, %s13
      %p131 = scmp.lt.s32.totalorder %s130, 7
      %s132 = scalar_select %p131, %s130, 7
      %s133 = smul.addr %s132, 8
      %s134 = scalar_lea.vmem %s0, %s133
      %p135 = pneg %p34
      %p136 = pneg %p31
      %s137 = smul.u32 2, %s13
      %p138 = scmp.lt.s32.totalorder %s137, 7
      %s139 = scalar_select %p138, %s137, 7
      %s140 = smul.addr %s139, 8
      %s141 = scalar_lea.vmem %s1, %s140
      %p142 = pneg %p60
      %p143 = pneg %p57
      %p144 = pneg %p86
      %p145 = pneg %p83
      %s146 = smul.u32 2, %s13
      %p147 = scmp.lt.s32.totalorder %s146, 7
      %s148 = scalar_select %p147, %s146, 7
      %s149 = smul.addr %s148, 8
      %s150 = scalar_lea.vmem %s2, %s149
      %s151 = smul.u32 2, %s13
      %p152 = scmp.lt.s32.totalorder %s151, 7
      %s153 = scalar_select %p152, %s151, 7
      %s154 = smul.addr %s153, 8
      %s155 = scalar_lea.vmem %s0, %s154
      %s156 = smul.u32 2, %s13
      %s157 = smul.u32 2, %s13
      %p158 = scmp.lt.s32.totalorder %s157, 7
      %s159 = scalar_select %p158, %s157, 7
      %s160 = smul.addr %s159, 8
      %s161 = scalar_lea.vmem %s1, %s160
      %s162 = smul.u32 2, %s13
      %s163 = smul.u32 2, %s13
      %p164 = scmp.lt.s32.totalorder %s163, 7
      %s165 = scalar_select %p164, %s163, 7
      %s166 = smul.addr %s165, 8
      %s167 = scalar_lea.vmem %s2, %s166
      %s168 = smul.u32 2, %s13
      %v169 = vld [vmem:[%s155] sm:$0xff]
      %v170 = vld [vmem:[%s155 + $0x8] sm:$0xff]
      %v171 = vld [vmem:[%s161] sm:$0xff]
      %v172 = vld [vmem:[%s161 + $0x8] sm:$0xff]
      %173 = vmax.xlane.f32.xlu0 %v169
      %v174 = vpop.xlane.xlu0 %173
      %175 = vmax.xlane.f32.xlu0 %v170
      %v176 = vpop.xlane.xlu0 %175
      %v177 = vsub.f32 %v169, %v174
      %v178 = vsub.f32 %v170, %v176
      %v179 = vmul.f32 %v177, 1.442695
      %v180 = vpow.pop %v179
      %v181 = vmul.f32 %v178, 1.442695
      %v182 = vpow.pop %v181
      %183 = vadd.xlane.f32.xlu0 %v180
      %v184 = vpop.xlane.xlu0 %183
      %185 = vadd.xlane.f32.xlu0 %v182
      %v186 = vpop.xlane.xlu0 %185
      %v187 = vlog2.pop %v184
      %v188 = vmul.f32 %v187, 0.6931472
      %v189 = vlog2.pop %v186
      %v190 = vmul.f32 %v189, 0.6931472
      %191 = vadd.xlane.f32.xlu0 %v169
      %v192 = vpop.xlane.xlu0 %191
      %193 = vadd.xlane.f32.xlu0 %v170
      %v194 = vpop.xlane.xlu0 %193
      %v195 = vlaneseq
      %v196 = vand.u32 %v195, 127
      %197 = vset.pattern.permute.xlu0 0
      %198 = vperm.xlu0 %197, %v171
      %v199 = vpop.permute.xlu0 %198
      %200 = vset.pattern.permute.xlu0 0
      %201 = vperm.xlu0 %200, %v172
      %v202 = vpop.permute.xlu0 %201
      %vm203 = vcmp.eq.s32.totalorder %v196, %v199
      %vm204 = vcmp.eq.s32.totalorder %v196, %v202
      %v205 = vsel %vm203, %v169, 0.0
      %v206 = vsel %vm204, %v170, 0.0
      %207 = vadd.xlane.f32.xlu0 %v205
      %v208 = vpop.xlane.xlu0 %207
      %209 = vadd.xlane.f32.xlu0 %v206
      %v210 = vpop.xlane.xlu0 %209
      %v211 = vadd.f32 %v188, %v174
      %v212 = vadd.f32 %v190, %v176
      %v213 = vmul.f32 %v192, 0.00078125
      %v214 = vmul.f32 %v194, 0.00078125
      %v215 = vsub.f32 %v211, %v213
      %v216 = vsub.f32 %v212, %v214
      %v217 = vmul.f32 %v208, 0.9
      %v218 = vmul.f32 %v210, 0.9
      %v219 = vsub.f32 %v215, %v217
      %v220 = vsub.f32 %v216, %v218
      %vm221 = vcmask 7168
      %222 = vst.msk [vmem:[%s167] sm:$0xff] %vm221, %v219
      %223 = vst.msk [vmem:[%s167 + $0x8] sm:$0xff] %vm221, %v220
      %s224 = smul.u32 2, %s13
      %p225 = scmp.lt.s32.totalorder %s224, 7
      %s226 = scalar_select %p225, %s224, 7
      %s227 = smul.addr %s226, 8
      %s228 = scalar_lea.vmem %s2, %s227
      // Predicated region
      $region29: #{tpu_custom_call.1} parent=27 // pred_check
        %p229 = pneg %p83
      $region30: #{tpu_custom_call.1} parent=27 // pred_check_branch
        %231 = sbr.rel (%p229) target = $region32
      $region31: #{tpu_custom_call.1} parent=27 // pred_region
        %s232 = smul.u32 2, %s13
      $region32: #{tpu_custom_call.1} parent=27 // pred_fallthru
        _
    $region28: #{tpu_custom_call.1} parent=5 // pred_fallthru
      _
    %p233 = scmp.le.s32.totalorder 2, %s8
    // Predicated region
    $region33: #{tpu_custom_call.1} parent=5 // pred_check
      %p234 = pneg %p233
    $region34: #{tpu_custom_call.1} parent=5 // pred_check_branch
      %236 = sbr.rel (%p234) target = $region36
    $region35: #{tpu_custom_call.1} parent=5 // pred_region
      %s237 = ssub.s32 %s8, 2
      // Predicated region
      $region37: #{tpu_custom_call.1} parent=35 // pred_check
        %p238 = pneg %p89
      $region38: #{tpu_custom_call.1} parent=35 // pred_check_branch
        %240 = sbr.rel (%p238) target = $region40
      $region39: #{tpu_custom_call.1} parent=35 // pred_region
        %s241 = smul.u32 2, %s14
        %p242 = scmp.lt.s32.totalorder %s241, 7
        %s243 = scalar_select %p242, %s241, 7
        %s244 = smul.addr %s243, 8
        %s245 = scalar_lea.vmem %s2, %s244
      $region40: #{tpu_custom_call.1} parent=35 // pred_fallthru
        _
    $region36: #{tpu_custom_call.1} parent=5 // pred_fallthru
      _
  $region6: #{tpu_custom_call.1} parent=0 // loop_footer
    %s12 = sadd.s32 1, %s8
  $region7: #{tpu_custom_call.1} parent=0 // loop_footer_branch
    %7 = sbr.rel target = $region3
  $region8: #{tpu_custom_call.1} parent=0 // loop_exit
    _

</llo_original>
